<compile_context>
chip_gen: v6e
topology: v6e:2x2x1
jax: 0.10.0
libtpu: 0.0.40
codegen_flags: <defaults>
</compile_context>

<pallas_src>
import jax
import jax.numpy as jnp
from jax.experimental import pallas as pl
from jax.experimental.pallas import tpu as pltpu

GATHER_DTYPE = jnp.bfloat16   # one-hot gather operands (selector is exactly 0/1 in bf16)
Y_DTYPE = jnp.bfloat16        # pre-BN intermediate written to HBM between the two passes
_GATHER_CHUNK = 512           # N-contraction chunk of the one-hot gather


def _round_up(x, m):
    return (x + m - 1) // m * m


def _repeat_matrix(P, K, T, dtype=jnp.float32):
    """(P, T) 0/1 matrix R with R[p, n*K+k] = (n == p): x(d,P) @ R repeats each column K times."""
    return (jnp.arange(T)[None, :] // K == jnp.arange(P)[:, None]).astype(dtype)


def local_spatial_encoding(coords, features, idx, dist, conv_w, conv_b,
                           bn_gamma, bn_beta, *, eps=1e-6):
    """coords (B,N,3), features (B,d,N,1), idx (B,N,K), dist (B,N,K) -> (B, 2d, N, K).

    Matches SharedMLP(10, d, bn=True, ReLU) applied to the RandLA-Net local spatial
    encoding concat, followed by the feature concat (training-mode BN batch statistics)."""
    B, N, _ = coords.shape
    d = features.shape[1]
    K = idx.shape[-1]
    NK = N * K
    f32 = jnp.float32

    # ---- generation-aware sizing (v5e/v6e: 128 MiB VMEM, v7x: 64 MiB per TC) ----
    try:
        vmem_cap = int(getattr(pltpu.get_tpu_info(), "vmem_capacity_bytes", 64 << 20))
    except Exception:
        vmem_cap = 64 << 20
    vmem_limit = min(vmem_cap * 3 // 4, 112 << 20)
    target_lanes = 2048 if vmem_cap > (96 << 20) else 1024

    # ---- tiling: P points per tile (lane tile T = P*K), channels padded to sublanes ----
    dp = _round_up(d, 8)                              # f32 sublane-aligned channel count
    P = 128 * max(1, target_lanes // (128 * K))
    if N <= P:
        P = _round_up(N, 8)                           # single tile; blocks == full dims
    N_pad = _round_up(N, P)
    NT = N_pad // P
    T = P * K
    NKp = N_pad * K
    padded_pts = N_pad != N

    # gather-source (contraction) chunking for the one-hot neighbor gather
    NCH = _GATHER_CHUNK if N > _GATHER_CHUNK else _round_up(N, 8)
    N_g = _round_up(N, NCH)
    n_chunks = N_g // NCH

    # ---- fold the 1x1 conv and hoist per-point projections out of the kernel ----
    # y = W0@c + W3@n + W6@(c-n) + W9*dist + b
    #   = (W0+W6)@(c-mu) + (W3-W6)@(n-mu) + W9*dist + [b + (W0+W3)@mu]
    W = conv_w.astype(f32)
    b_f = conv_b.astype(f32)
    gamma_f = bn_gamma.astype(f32)
    beta_f = bn_beta.astype(f32)
    feat_cf = features[:, :, :, 0].astype(f32)                                # (B, d, N)
    if dp != d:
        W = jnp.pad(W, ((0, dp - d), (0, 0)))
        b_f = jnp.pad(b_f, (0, dp - d))
        gamma_f = jnp.pad(gamma_f, (0, dp - d))
        beta_f = jnp.pad(beta_f, (0, dp - d))
        feat_cf = jnp.pad(feat_cf, ((0, 0), (0, dp - d), (0, 0)))
    W0, W3, W6, W9 = W[:, 0:3], W[:, 3:6], W[:, 6:9], W[:, 9:10]

    coords_f = coords.astype(f32)
    mu = jnp.mean(coords_f, axis=1, keepdims=True)                            # (B, 1, 3)
    cc = coords_f - mu                                                        # centered coords
    pn_full = jnp.einsum('dc,bnc->bdn', W3 - W6, cc)                          # (B, dp, N)
    pc_full = jnp.einsum('dc,bnc->bdn', W0 + W6, cc)                          # (B, dp, N)
    bias_eff = b_f[None, :] + jnp.einsum('dc,bc->bd', W0 + W3, mu[:, 0, :])   # (B, dp)
    pc_full = pc_full + bias_eff[:, :, None]

    # point padding (tiling) and gather-source padding (contraction chunking)
    idx_i = idx.astype(jnp.int32)
    dist_f = dist.astype(f32)
    if padded_pts:
        pad = N_pad - N
        pc_full = jnp.pad(pc_full, ((0, 0), (0, 0), (0, pad)))
        feat_cf = jnp.pad(feat_cf, ((0, 0), (0, 0), (0, pad)))
        idx_i = jnp.pad(idx_i, ((0, 0), (0, pad), (0, 0)))
        dist_f = jnp.pad(dist_f, ((0, 0), (0, pad), (0, 0)))
    if N_g != N:
        pn_full = jnp.pad(pn_full, ((0, 0), (0, 0), (0, N_g - N)))
    pn_g = pn_full.astype(GATHER_DTYPE)                                       # (B, dp, N_g)
    idx_flat = idx_i.reshape(B, 1, NKp)                                       # j = n*K + k
    dist_flat = dist_f.reshape(B, 1, NKp)

    # hoisted constants: K-fold repeat matrix (exact 0/1 in f32) and the dist weight
    rep = _repeat_matrix(P, K, T, f32)                                        # (P, T)
    wd = W9                                                                   # (dp, 1)

    # -------- Pass A: folded conv (chunked one-hot gather) + fused BN partial stats --------
    def pass_a_kernel(pn_ref, pc_ref, idx_ref, dist_ref, wd_ref, rep_ref,
                      y_ref, sum_ref, ssq_ref):
        idx_row = idx_ref[0]                                                  # (1, T) i32
        dist_row = dist_ref[0]                                                # (1, T) f32

        # neighbor gather = chunked one-hot matmul: sel[n, j] = (n == idx[j])
        if n_chunks == 1:
            pn_all = pn_ref[0]                                                # (dp, N_g)
            row = jax.lax.broadcasted_iota(jnp.int32, (N_g, 1), 0)
            sel = (row == idx_row).astype(pn_all.dtype)                       # (N_g, T)
            nbr = jnp.dot(pn_all, sel, preferred_element_type=jnp.float32)
        else:
            def gather_chunk(c, acc):
                off = pl.multiple_of(c * NCH, NCH)
                pn_c = pn_ref[0, :, pl.ds(off, NCH)]                          # (dp, NCH)
                row = jax.lax.broadcasted_iota(jnp.int32, (NCH, 1), 0) + off
                sel = (row == idx_row).astype(pn_c.dtype)                     # (NCH, T)
                return acc + jnp.dot(pn_c, sel, preferred_element_type=jnp.float32)
            nbr = jax.lax.fori_loop(0, n_chunks, gather_chunk,
                                    jnp.zeros((dp, T), jnp.float32))

        # center term repeated K times along lanes + distance channel
        center = jnp.dot(pc_ref[0], rep_ref[...], preferred_element_type=jnp.float32)
        y = center + nbr + wd_ref[...] * dist_row                             # (dp, T) f32
        y_ref[0] = y.astype(y_ref.dtype)

        # BN batch statistics (padded point lanes masked out; taken from the f32 value)
        if padded_pts:
            lane = jax.lax.broadcasted_iota(jnp.int32, (1, T), 1)
            pt = pl.program_id(1) * P + lane // K
            y = jnp.where(pt < N, y, 0.0)
        sum_ref[0, 0] = jnp.sum(y, axis=1, keepdims=True)
        ssq_ref[0, 0] = jnp.sum(y * y, axis=1, keepdims=True)

    y, psum, pssq = pl.pallas_call(
        pass_a_kernel,
        out_shape=(jax.ShapeDtypeStruct((B, dp, NKp), Y_DTYPE),
                   jax.ShapeDtypeStruct((B, NT, dp, 1), f32),
                   jax.ShapeDtypeStruct((B, NT, dp, 1), f32)),
        grid=(B, NT),
        in_specs=[
            pl.BlockSpec((1, dp, N_g), lambda b, t: (b, 0, 0)),   # gather table, resident per batch
            pl.BlockSpec((1, dp, P), lambda b, t: (b, 0, t)),     # this tile's center projections
            pl.BlockSpec((1, 1, T), lambda b, t: (b, 0, t)),
            pl.BlockSpec((1, 1, T), lambda b, t: (b, 0, t)),
            pl.BlockSpec((dp, 1), lambda b, t: (0, 0)),           # dist weight (constant)
            pl.BlockSpec((P, T), lambda b, t: (0, 0)),            # repeat matrix (constant)
        ],
        out_specs=[
            pl.BlockSpec((1, dp, T), lambda b, t: (b, 0, t)),
            pl.BlockSpec((1, 1, dp, 1), lambda b, t: (b, t, 0, 0)),
            pl.BlockSpec((1, 1, dp, 1), lambda b, t: (b, t, 0, 0)),
        ],
        compiler_params=pltpu.CompilerParams(
            dimension_semantics=("parallel", "parallel"),
            vmem_limit_bytes=vmem_limit),
    )(pn_g, pc_full, idx_flat, dist_flat, wd, rep)

    # ---- BN finalize (training-mode batch stats over the REAL B*N*K positions) ----
    cnt = jnp.float32(B * NK)
    s = jnp.sum(psum[..., 0], axis=(0, 1))                                    # (dp,)
    sq = jnp.sum(pssq[..., 0], axis=(0, 1))                                   # (dp,)
    mean = s / cnt
    var = jnp.maximum(sq / cnt - mean * mean, 0.0)        # biased var, as PyTorch training BN
    scale = gamma_f * jax.lax.rsqrt(var + eps)
    shift = beta_f - mean * scale

    # -------- Pass B: BN apply + ReLU + feature concat (lane-dense, channels-first) --------
    def pass_b_kernel(y_ref, feat_ref, rep_ref, scale_ref, shift_ref, out_ref):
        z = y_ref[0].astype(jnp.float32) * scale_ref[...] + shift_ref[...]
        out_ref[0, 0:dp, :] = jnp.maximum(z, 0.0)
        out_ref[0, dp:2 * dp, :] = jnp.dot(feat_ref[0], rep_ref[...],
                                           preferred_element_type=jnp.float32)

    out_cf = pl.pallas_call(
        pass_b_kernel,
        out_shape=jax.ShapeDtypeStruct((B, 2 * dp, NKp), f32),
        grid=(B, NT),
        in_specs=[
            pl.BlockSpec((1, dp, T), lambda b, t: (b, 0, t)),
            pl.BlockSpec((1, dp, P), lambda b, t: (b, 0, t)),
            pl.BlockSpec((P, T), lambda b, t: (0, 0)),
            pl.BlockSpec((dp, 1), lambda b, t: (0, 0)),
            pl.BlockSpec((dp, 1), lambda b, t: (0, 0)),
        ],
        out_specs=pl.BlockSpec((1, 2 * dp, T), lambda b, t: (b, 0, t)),
        compiler_params=pltpu.CompilerParams(
            dimension_semantics=("parallel", "parallel"),
            vmem_limit_bytes=vmem_limit),
    )(y, feat_cf, rep, scale[:, None], shift[:, None])

    # drop channel / point padding; free reshape to the PyTorch NCHW (B, 2d, N, K) output
    if dp != d:
        out_cf = jnp.concatenate([out_cf[:, :d], out_cf[:, dp:dp + d]], axis=1)
    if padded_pts:
        out_cf = out_cf[:, :, :NK]
    return out_cf.reshape(B, 2 * d, N, K)


def _reference_lse(coords, features, idx, dist, conv_w, conv_b, gamma, beta, eps=1e-6):
    """Pure-JAX reference mirroring the PyTorch LocalSpatialEncoding forward."""
    B, N, K = idx.shape
    nbr = jax.vmap(lambda c, i: c[i])(coords, idx)                            # (B, N, K, 3)
    center = jnp.broadcast_to(coords[:, :, None, :], nbr.shape)               # (B, N, K, 3)
    concat = jnp.concatenate([center, nbr, center - nbr, dist[..., None]], axis=-1)
    y = jnp.einsum("bnkc,dc->bnkd", concat, conv_w) + conv_b                  # (B, N, K, d)
    mean = jnp.mean(y, axis=(0, 1, 2))
    var = jnp.mean((y - mean) ** 2, axis=(0, 1, 2))
    z = jnp.maximum((y - mean) * jax.lax.rsqrt(var + eps) * gamma + beta, 0.0)
    top = jnp.transpose(z, (0, 3, 1, 2))                                      # (B, d, N, K)
    d = features.shape[1]
    bottom = jnp.broadcast_to(features, (B, d, N, K))
    return jnp.concatenate([top, bottom], axis=1)


if __name__ == "__main__":
    def run_case(B, N, K, d, tol=5e-2):
        key = jax.random.PRNGKey(0)
        ks = jax.random.split(key, 6)
        coords = jax.random.normal(ks[0], (B, N, 3), jnp.float32)
        features = jax.random.normal(ks[1], (B, d, N, 1), jnp.float32)
        idx = jax.random.randint(ks[2], (B, N, K), 0, N, jnp.int32)
        dist = jax.random.uniform(ks[3], (B, N, K), jnp.float32)
        conv_w = jax.random.normal(ks[4], (d, 10), jnp.float32) * 0.1
        conv_b = jax.random.normal(ks[5], (d,), jnp.float32) * 0.01
        gamma = jnp.ones((d,), jnp.float32)
        beta = jnp.zeros((d,), jnp.float32)

        out = local_spatial_encoding(coords, features, idx, dist,
                                     conv_w, conv_b, gamma, beta)
        out = jax.block_until_ready(out)
        assert out.shape == (B, 2 * d, N, K), out.shape
        assert out.dtype == jnp.float32

        ref = _reference_lse(coords, features, idx, dist, conv_w, conv_b, gamma, beta)
        err = float(jnp.max(jnp.abs(out - ref)))
        assert err < tol, f"max abs err {err} (B={B},N={N},K={K},d={d})"

    # small case: single point-tile, single gather chunk, no padding
    run_case(2, 16, 8, 8)
    # larger case: exercises the chunked gather loop, point padding + BN masking,
    # multi-tile grid, and channel padding (d=12 -> 16)
    run_case(1, 600, 4, 12)

    print("KERNEL_OK")
</pallas_src>

<mosaic_0001>
module attributes {stable_mosaic.version = 11 : i64} {
  func.func @pass_a_kernel(%arg0: i32, %arg1: i32, %arg2: memref<1x8x16xbf16, #tpu.memory_space<vmem>>, %arg3: memref<1x8x16xf32, #tpu.memory_space<vmem>>, %arg4: memref<1x1x128xi32, #tpu.memory_space<vmem>>, %arg5: memref<1x1x128xf32, #tpu.memory_space<vmem>>, %arg6: memref<8x1xf32, #tpu.memory_space<vmem>>, %arg7: memref<16x128xf32, #tpu.memory_space<vmem>>, %arg8: memref<1x8x128xbf16, #tpu.memory_space<vmem>>, %arg9: memref<1x1x8x1xf32, #tpu.memory_space<vmem>>, %arg10: memref<1x1x8x1xf32, #tpu.memory_space<vmem>>) attributes {dimension_semantics = [#tpu.dimension_semantics<parallel>, #tpu.dimension_semantics<parallel>], iteration_bounds = array<i64: 2, 1>, scalar_prefetch = 0 : i64, scratch_operands = 0 : i64, tpu.core_type = #tpu.core_type<tc>, window_params = [{transform_indices = @transform_0, window_bounds = array<i64: 1, 8, 16>}, {transform_indices = @transform_1, window_bounds = array<i64: 1, 8, 16>}, {transform_indices = @transform_2, window_bounds = array<i64: 1, 1, 128>}, {transform_indices = @transform_3, window_bounds = array<i64: 1, 1, 128>}, {pipeline_mode = #tpu.pipeline_mode<synchronous>, transform_indices = @transform_4, window_bounds = array<i64: 8, 1>}, {pipeline_mode = #tpu.pipeline_mode<synchronous>, transform_indices = @transform_5, window_bounds = array<i64: 16, 128>}, {transform_indices = @transform_6, window_bounds = array<i64: 1, 8, 128>}, {transform_indices = @transform_7, window_bounds = array<i64: 1, 1, 8, 1>}, {transform_indices = @transform_8, window_bounds = array<i64: 1, 1, 8, 1>}]} {
    %c0 = arith.constant 0 : index
    %c0_0 = arith.constant 0 : index
    %c0_1 = arith.constant 0 : index
    %0 = vector.load %arg4[%c0, %c0_0, %c0_1] : memref<1x1x128xi32, #tpu.memory_space<vmem>>, vector<1x1x128xi32>
    %1 = vector.shape_cast %0 : vector<1x1x128xi32> to vector<1x128xi32>
    %c0_2 = arith.constant 0 : index
    %c0_3 = arith.constant 0 : index
    %c0_4 = arith.constant 0 : index
    %2 = vector.load %arg5[%c0_2, %c0_3, %c0_4] : memref<1x1x128xf32, #tpu.memory_space<vmem>>, vector<1x1x128xf32>
    %3 = vector.shape_cast %2 : vector<1x1x128xf32> to vector<1x128xf32>
    %c0_5 = arith.constant 0 : index
    %c0_6 = arith.constant 0 : index
    %c0_7 = arith.constant 0 : index
    %4 = vector.load %arg2[%c0_5, %c0_6, %c0_7] : memref<1x8x16xbf16, #tpu.memory_space<vmem>>, vector<1x8x16xbf16>
    %5 = vector.shape_cast %4 : vector<1x8x16xbf16> to vector<8x16xbf16>
    %6 = tpu.iota {dimensions = array<i32: 0>} : vector<16x1xi32>
    %7 = vector.broadcast %6 : vector<16x1xi32> to vector<16x128xi32>
    %8 = vector.broadcast %1 : vector<1x128xi32> to vector<16x128xi32>
    %9 = arith.cmpi eq, %7, %8 : vector<16x128xi32>
    %10 = arith.extui %9 : vector<16x128xi1> to vector<16x128xi32>
    %11 = arith.sitofp %10 : vector<16x128xi32> to vector<16x128xf32>
    %12 = arith.truncf %11 : vector<16x128xf32> to vector<16x128xbf16>
    %cst = arith.constant dense<0.000000e+00> : vector<8x128xf32>
    %13 = tpu.matmul %5, %12, %cst {dimension_numbers = #tpu.dot_dimension_numbers<[1], [0], [0], [1], [0, 0, 1, 1], [], []>} : vector<8x16xbf16>, vector<16x128xbf16>, vector<8x128xf32> -> vector<8x128xf32>
    %c0_8 = arith.constant 0 : index
    %c0_9 = arith.constant 0 : index
    %c0_10 = arith.constant 0 : index
    %14 = vector.load %arg3[%c0_8, %c0_9, %c0_10] : memref<1x8x16xf32, #tpu.memory_space<vmem>>, vector<1x8x16xf32>
    %15 = vector.shape_cast %14 : vector<1x8x16xf32> to vector<8x16xf32>
    %c0_11 = arith.constant 0 : index
    %c0_12 = arith.constant 0 : index
    %16 = vector.load %arg7[%c0_11, %c0_12] : memref<16x128xf32, #tpu.memory_space<vmem>>, vector<16x128xf32>
    %cst_13 = arith.constant dense<0.000000e+00> : vector<8x128xf32>
    %17 = tpu.matmul %15, %16, %cst_13 {dimension_numbers = #tpu.dot_dimension_numbers<[1], [0], [0], [1], [0, 0, 1, 1], [], []>} : vector<8x16xf32>, vector<16x128xf32>, vector<8x128xf32> -> vector<8x128xf32>
    %18 = arith.addf %17, %13 : vector<8x128xf32>
    %c0_14 = arith.constant 0 : index
    %c0_15 = arith.constant 0 : index
    %19 = vector.load %arg6[%c0_14, %c0_15] : memref<8x1xf32, #tpu.memory_space<vmem>>, vector<8x1xf32>
    %20 = vector.broadcast %19 : vector<8x1xf32> to vector<8x128xf32>
    %21 = vector.broadcast %3 : vector<1x128xf32> to vector<8x128xf32>
    %22 = arith.mulf %20, %21 : vector<8x128xf32>
    %23 = arith.addf %18, %22 : vector<8x128xf32>
    %24 = arith.truncf %23 : vector<8x128xf32> to vector<8x128xbf16>
    %c0_16 = arith.constant 0 : index
    %c0_17 = arith.constant 0 : index
    %c0_18 = arith.constant 0 : index
    %25 = vector.load %arg8[%c0_16, %c0_17, %c0_18] : memref<1x8x128xbf16, #tpu.memory_space<vmem>>, vector<1x8x128xbf16>
    %26 = vector.shape_cast %25 : vector<1x8x128xbf16> to vector<8x128xbf16>
    %27 = vector.shape_cast %24 : vector<8x128xbf16> to vector<1x8x128xbf16>
    tpu.vector_store %arg8[%c0_16, %c0_17, %c0_18], %27 {strides = array<i32>} : memref<1x8x128xbf16, #tpu.memory_space<vmem>>, vector<1x8x128xbf16>,
    %cst_19 = arith.constant dense<0.000000e+00> : vector<8xf32>
    %28 = vector.multi_reduction <add>, %23, %cst_19 [1] : vector<8x128xf32> to vector<8xf32>
    %29 = vector.shape_cast %28 : vector<8xf32> to vector<8x1xf32>
    %c0_20 = arith.constant 0 : index
    %c0_21 = arith.constant 0 : index
    %c0_22 = arith.constant 0 : index
    %c0_23 = arith.constant 0 : index
    %30 = vector.load %arg9[%c0_20, %c0_21, %c0_22, %c0_23] : memref<1x1x8x1xf32, #tpu.memory_space<vmem>>, vector<1x1x8x1xf32>
    %31 = vector.shape_cast %30 : vector<1x1x8x1xf32> to vector<8x1xf32>
    %32 = vector.shape_cast %29 : vector<8x1xf32> to vector<1x1x8x1xf32>
    tpu.vector_store %arg9[%c0_20, %c0_21, %c0_22, %c0_23], %32 {strides = array<i32>} : memref<1x1x8x1xf32, #tpu.memory_space<vmem>>, vector<1x1x8x1xf32>,
    %33 = arith.mulf %23, %23 : vector<8x128xf32>
    %cst_24 = arith.constant dense<0.000000e+00> : vector<8xf32>
    %34 = vector.multi_reduction <add>, %33, %cst_24 [1] : vector<8x128xf32> to vector<8xf32>
    %35 = vector.shape_cast %34 : vector<8xf32> to vector<8x1xf32>
    %c0_25 = arith.constant 0 : index
    %c0_26 = arith.constant 0 : index
    %c0_27 = arith.constant 0 : index
    %c0_28 = arith.constant 0 : index
    %36 = vector.load %arg10[%c0_25, %c0_26, %c0_27, %c0_28] : memref<1x1x8x1xf32, #tpu.memory_space<vmem>>, vector<1x1x8x1xf32>
    %37 = vector.shape_cast %36 : vector<1x1x8x1xf32> to vector<8x1xf32>
    %38 = vector.shape_cast %35 : vector<8x1xf32> to vector<1x1x8x1xf32>
    tpu.vector_store %arg10[%c0_25, %c0_26, %c0_27, %c0_28], %38 {strides = array<i32>} : memref<1x1x8x1xf32, #tpu.memory_space<vmem>>, vector<1x1x8x1xf32>,
    return
  }
  func.func @transform_0(%arg0: i32, %arg1: i32) -> (i32, i32, i32) {
    %c0_i32 = arith.constant 0 : i32
    %c0_i32_0 = arith.constant 0 : i32
    %c0_i32_1 = arith.constant 0 : i32
    return %arg0, %c0_i32, %c0_i32_0 : i32, i32, i32
  }
  func.func @transform_1(%arg0: i32, %arg1: i32) -> (i32, i32, i32) {
    %c0_i32 = arith.constant 0 : i32
    %c0_i32_0 = arith.constant 0 : i32
    return %arg0, %c0_i32, %arg1 : i32, i32, i32
  }
  func.func @transform_2(%arg0: i32, %arg1: i32) -> (i32, i32, i32) {
    %c0_i32 = arith.constant 0 : i32
    %c0_i32_0 = arith.constant 0 : i32
    return %arg0, %c0_i32, %arg1 : i32, i32, i32
  }
  func.func @transform_3(%arg0: i32, %arg1: i32) -> (i32, i32, i32) {
    %c0_i32 = arith.constant 0 : i32
    %c0_i32_0 = arith.constant 0 : i32
    return %arg0, %c0_i32, %arg1 : i32, i32, i32
  }
  func.func @transform_4(%arg0: i32, %arg1: i32) -> (i32, i32) {
    %c0_i32 = arith.constant 0 : i32
    %c0_i32_0 = arith.constant 0 : i32
    %c0_i32_1 = arith.constant 0 : i32
    return %c0_i32, %c0_i32_0 : i32, i32
  }
  func.func @transform_5(%arg0: i32, %arg1: i32) -> (i32, i32) {
    %c0_i32 = arith.constant 0 : i32
    %c0_i32_0 = arith.constant 0 : i32
    %c0_i32_1 = arith.constant 0 : i32
    return %c0_i32, %c0_i32_0 : i32, i32
  }
  func.func @transform_6(%arg0: i32, %arg1: i32) -> (i32, i32, i32) {
    %c0_i32 = arith.constant 0 : i32
    %c0_i32_0 = arith.constant 0 : i32
    return %arg0, %c0_i32, %arg1 : i32, i32, i32
  }
  func.func @transform_7(%arg0: i32, %arg1: i32) -> (i32, i32, i32, i32) {
    %c0_i32 = arith.constant 0 : i32
    %c0_i32_0 = arith.constant 0 : i32
    %c0_i32_1 = arith.constant 0 : i32
    return %arg0, %arg1, %c0_i32, %c0_i32_0 : i32, i32, i32, i32
  }
  func.func @transform_8(%arg0: i32, %arg1: i32) -> (i32, i32, i32, i32) {
    %c0_i32 = arith.constant 0 : i32
    %c0_i32_0 = arith.constant 0 : i32
    %c0_i32_1 = arith.constant 0 : i32
    return %arg0, %arg1, %c0_i32, %c0_i32_0 : i32, i32, i32, i32
  }
}

</mosaic_0001>

<llo_original>
// kernel: tpu_custom_call.1
$region0: #{tpu_custom_call.1}
  #allocation0 [shape = 'u32[]', space=smem, size = 0x4, offset = 0x4, fixed_abs, tag = 'smem constant byte address 0x4 - core index']
  #allocation1 [shape = 'u32[144,128]{1,0:T(1,128)}', space=vmem, size = 0x12000, scoped, tag = 'internal scratch']
  %s0 = inlined_call_operand.hbm [shape: bf16[2,8,16], index: 0, kind: input, shape index: {}]
  %s1 = inlined_call_operand.hbm [shape: f32[2,8,16], index: 1, kind: input, shape index: {}]
  %s2 = inlined_call_operand.vmem [shape: s32[2,1,128], index: 2, kind: input, shape index: {}]
  %s3 = inlined_call_operand.hbm [shape: f32[2,1,128], index: 3, kind: input, shape index: {}]
  %s4 = inlined_call_operand.vmem [shape: f32[8,1], index: 4, kind: input, shape index: {}]
  %s5 = inlined_call_operand.vmem [shape: f32[16,128], index: 5, kind: input, shape index: {}]
  %s6 = inlined_call_operand.hbm [shape: bf16[2,8,128], index: 6, kind: output, shape index: {0}]
  %s7 = inlined_call_operand.vmem [shape: f32[2,1,8,1], index: 7, kind: output, shape index: {1}]
  %s8 = inlined_call_operand.vmem [shape: f32[2,1,8,1], index: 8, kind: output, shape index: {2}]
  %9 = xla_tuple %s6, %s7, %s8
  %s10 = sld [smem:[#allocation0]]
  $region85: #{tpu_custom_call.1} parent=0
    _
  %s12 = ssub.s32 1, %s10
  %s13 = scalar_select 0, %s12, %s10
  $region1: #{tpu_custom_call.1} parent=0
    #allocation2 [shape = 'u8[4096]{0}', space=vmem, size = 0x1000, scoped, tag = 'input window, operand 0']
    #allocation3 [shape = 's32[2]{0}', space=sflag, size = 0x8, scoped, tag = 'scoped memory for tpu_custom_call.1']
    #allocation4 [shape = 's32[2]{0}', space=sflag, size = 0x8, scoped, tag = 'scoped memory for tpu_custom_call.1']
    #allocation5 [shape = 'u8[8192]{0}', space=vmem, size = 0x2000, scoped, tag = 'input window, operand 1']
    #allocation6 [shape = 's32[2]{0}', space=sflag, size = 0x8, scoped, tag = 'scoped memory for tpu_custom_call.1']
    #allocation7 [shape = 'u8[1024]{0}', space=vmem, size = 0x400, scoped, tag = 'input window, operand 3']
    #allocation8 [shape = 'u8[4096]{0}', space=vmem, size = 0x1000, scoped, tag = 'output window, operand 0']
    %14 = vsyncpa [#allocation3], 0
    %s15 = scalar_lea.sflag [#allocation3], 1
    %16 = vsyncpa %s15, 0
    %17 = vsyncpa [#allocation6], 0
    %s18 = scalar_lea.sflag [#allocation6], 1
    %19 = vsyncpa %s18, 0
    %20 = vsyncpa [#allocation4], 0
    %s21 = scalar_lea.sflag [#allocation4], 1
    %22 = vsyncpa %s21, 0
    loop: start=0, step=1, limit=4
    $region2: #{tpu_custom_call.1} parent=1 // loop_pre_header
      _
    $region3: #{tpu_custom_call.1} parent=1 // loop_header
      %s24 = sphi 0, %s28
      %p25 = scmp.ge.s32.totalorder %s24, 4
      %s31 = sphi 0, %s43
      %s32 = sphi 0, %s39
      %s33 = sphi 0, %s31
      %s34 = sphi 0, %s32
      %s35 = sphi 0, %s33
      %s36 = sphi 0, %s34
      %s46 = sphi 0, %s48
      %s49 = sphi 0, %s46
      %s50 = sphi 0, %s49
      %s66 = sphi 0, %s50
      %s74 = sphi 0, %s76
      %s77 = sphi 0, %s74
      %s78 = sphi 0, %s77
      %s94 = sphi 0, %s78
      %s102 = sphi 0, %s104
      %s105 = sphi 0, %s102
      %s106 = sphi 0, %s105
      %s122 = sphi 0, %s106
      %s130 = sphi 0, %s132
      %s133 = sphi 0, %s130
      %s134 = sphi 0, %s133
      %s150 = sphi 0, %s134
      %s154 = sphi 0, %s154
      %s156 = sphi 0, %s154
      %s157 = sphi 0, %s156
      %s171 = sphi 0, %s157
      %s175 = sphi 0, %s175
      %s177 = sphi 0, %s175
      %s178 = sphi 0, %s177
      %s192 = sphi 0, %s178
      %s200 = sphi 0, %s202
      %s203 = sphi 0, %s200
      %s204 = sphi 0, %s203
      %s220 = sphi 0, %s204
      %s228 = sphi 0, %s230
      %s231 = sphi 0, %s228
      %s232 = sphi 0, %s231
      %s248 = sphi 0, %s232
      %s256 = sphi 0, %s258
      %s259 = sphi 0, %s256
      %s260 = sphi 0, %s259
      %s276 = sphi 0, %s260
    $region4: #{tpu_custom_call.1} parent=1 // loop_header_branch
      %27 = sbr.rel (%p25) target = $region8
    $region5: #{tpu_custom_call.1} parent=1 // loop_body
      %s29 = ssub.s32 %s24, 1
      %s30 = ssub.s32 %s24, 2
      %s37 = sadd.s32 1, %s32
      %p38 = scmp.ge.s32.totalorder %s37, 1
      %s39 = scalar_select %p38, 0, %s37
      %s40 = sadd.s32 1, %s31
      %s41 = scalar_select %p38, %s40, %s31
      %p42 = scmp.ge.s32.totalorder %s41, 2
      %s43 = scalar_select %p42, 0, %s41
      %s44 = ssub.s32 %s31, %s43
      %p45 = scmp.eq.s32.totalorder %s44, 0
      %s47 = sadd.s32 %s46, 1
      %s48 = scalar_select %p45, %s46, %s47
      %p51 = pneg %p45
      %p52 = scmp.eq.s32.totalorder %s24, 1
      %p53 = por %p51, %p52
      %p54 = scmp.ne.s32.totalorder %s46, %s49
      %p55 = scmp.eq.s32.totalorder %s24, 0
      %p56 = por %p54, %p55
      %p57 = scmp.ne.s32.totalorder %s46, %s49
      %p58 = scmp.eq.s32.totalorder %s29, 1
      %p59 = por %p57, %p58
      %p60 = scmp.ne.s32.totalorder %s49, %s50
      %p61 = scmp.eq.s32.totalorder %s29, 0
      %p62 = por %p60, %p61
      %p63 = scmp.ne.s32.totalorder %s49, %s50
      %p64 = scmp.eq.s32.totalorder %s30, 1
      %p65 = por %p63, %p64
      %p67 = scmp.ne.s32.totalorder %s50, %s66
      %p68 = scmp.eq.s32.totalorder %s30, 0
      %p69 = por %p67, %p68
      %s70 = ssub.s32 %s31, %s43
      %s71 = ssub.s32 %s32, %s39
      %s72 = sor.u32 %s70, %s71
      %p73 = scmp.eq.s32.totalorder %s72, 0
      %s75 = sadd.s32 %s74, 1
      %s76 = scalar_select %p73, %s74, %s75
      %p79 = pneg %p73
      %p80 = scmp.eq.s32.totalorder %s24, 1
      %p81 = por %p79, %p80
      %p82 = scmp.ne.s32.totalorder %s74, %s77
      %p83 = scmp.eq.s32.totalorder %s24, 0
      %p84 = por %p82, %p83
      %p85 = scmp.ne.s32.totalorder %s74, %s77
      %p86 = scmp.eq.s32.totalorder %s29, 1
      %p87 = por %p85, %p86
      %p88 = scmp.ne.s32.totalorder %s77, %s78
      %p89 = scmp.eq.s32.totalorder %s29, 0
      %p90 = por %p88, %p89
      %p91 = scmp.ne.s32.totalorder %s77, %s78
      %p92 = scmp.eq.s32.totalorder %s30, 1
      %p93 = por %p91, %p92
      %p95 = scmp.ne.s32.totalorder %s78, %s94
      %p96 = scmp.eq.s32.totalorder %s30, 0
      %p97 = por %p95, %p96
      %s98 = ssub.s32 %s31, %s43
      %s99 = ssub.s32 %s32, %s39
      %s100 = sor.u32 %s98, %s99
      %p101 = scmp.eq.s32.totalorder %s100, 0
      %s103 = sadd.s32 %s102, 1
      %s104 = scalar_select %p101, %s102, %s103
      %p107 = pneg %p101
      %p108 = scmp.eq.s32.totalorder %s24, 1
      %p109 = por %p107, %p108
      %p110 = scmp.ne.s32.totalorder %s102, %s105
      %p111 = scmp.eq.s32.totalorder %s24, 0
      %p112 = por %p110, %p111
      %p113 = scmp.ne.s32.totalorder %s102, %s105
      %p114 = scmp.eq.s32.totalorder %s29, 1
      %p115 = por %p113, %p114
      %p116 = scmp.ne.s32.totalorder %s105, %s106
      %p117 = scmp.eq.s32.totalorder %s29, 0
      %p118 = por %p116, %p117
      %p119 = scmp.ne.s32.totalorder %s105, %s106
      %p120 = scmp.eq.s32.totalorder %s30, 1
      %p121 = por %p119, %p120
      %p123 = scmp.ne.s32.totalorder %s106, %s122
      %p124 = scmp.eq.s32.totalorder %s30, 0
      %p125 = por %p123, %p124
      %s126 = ssub.s32 %s31, %s43
      %s127 = ssub.s32 %s32, %s39
      %s128 = sor.u32 %s126, %s127
      %p129 = scmp.eq.s32.totalorder %s128, 0
      %s131 = sadd.s32 %s130, 1
      %s132 = scalar_select %p129, %s130, %s131
      %p135 = pneg %p129
      %p136 = scmp.eq.s32.totalorder %s24, 1
      %p137 = por %p135, %p136
      %p138 = scmp.ne.s32.totalorder %s130, %s133
      %p139 = scmp.eq.s32.totalorder %s24, 0
      %p140 = por %p138, %p139
      %p141 = scmp.ne.s32.totalorder %s130, %s133
      %p142 = scmp.eq.s32.totalorder %s29, 1
      %p143 = por %p141, %p142
      %p144 = scmp.ne.s32.totalorder %s133, %s134
      %p145 = scmp.eq.s32.totalorder %s29, 0
      %p146 = por %p144, %p145
      %p147 = scmp.ne.s32.totalorder %s133, %s134
      %p148 = scmp.eq.s32.totalorder %s30, 1
      %p149 = por %p147, %p148
      %p151 = scmp.ne.s32.totalorder %s134, %s150
      %p152 = scmp.eq.s32.totalorder %s30, 0
      %p153 = por %p151, %p152
      %s155 = sadd.s32 %s154, 1
      %p158 = scmp.eq.s32.totalorder %s24, 1
      %p159 = scmp.ne.s32.totalorder %s154, %s156
      %p160 = scmp.eq.s32.totalorder %s24, 0
      %p161 = por %p159, %p160
      %p162 = scmp.ne.s32.totalorder %s154, %s156
      %p163 = scmp.eq.s32.totalorder %s29, 1
      %p164 = por %p162, %p163
      %p165 = scmp.ne.s32.totalorder %s156, %s157
      %p166 = scmp.eq.s32.totalorder %s29, 0
      %p167 = por %p165, %p166
      %p168 = scmp.ne.s32.totalorder %s156, %s157
      %p169 = scmp.eq.s32.totalorder %s30, 1
      %p170 = por %p168, %p169
      %p172 = scmp.ne.s32.totalorder %s157, %s171
      %p173 = scmp.eq.s32.totalorder %s30, 0
      %p174 = por %p172, %p173
      %s176 = sadd.s32 %s175, 1
      %p179 = scmp.eq.s32.totalorder %s24, 1
      %p180 = scmp.ne.s32.totalorder %s175, %s177
      %p181 = scmp.eq.s32.totalorder %s24, 0
      %p182 = por %p180, %p181
      %p183 = scmp.ne.s32.totalorder %s175, %s177
      %p184 = scmp.eq.s32.totalorder %s29, 1
      %p185 = por %p183, %p184
      %p186 = scmp.ne.s32.totalorder %s177, %s178
      %p187 = scmp.eq.s32.totalorder %s29, 0
      %p188 = por %p186, %p187
      %p189 = scmp.ne.s32.totalorder %s177, %s178
      %p190 = scmp.eq.s32.totalorder %s30, 1
      %p191 = por %p189, %p190
      %p193 = scmp.ne.s32.totalorder %s178, %s192
      %p194 = scmp.eq.s32.totalorder %s30, 0
      %p195 = por %p193, %p194
      %s196 = ssub.s32 %s31, %s43
      %s197 = ssub.s32 %s32, %s39
      %s198 = sor.u32 %s196, %s197
      %p199 = scmp.eq.s32.totalorder %s198, 0
      %s201 = sadd.s32 %s200, 1
      %s202 = scalar_select %p199, %s200, %s201
      %p205 = pneg %p199
      %p206 = scmp.eq.s32.totalorder %s24, 1
      %p207 = por %p205, %p206
      %p208 = scmp.ne.s32.totalorder %s200, %s203
      %p209 = scmp.eq.s32.totalorder %s24, 0
      %p210 = por %p208, %p209
      %p211 = scmp.ne.s32.totalorder %s200, %s203
      %p212 = scmp.eq.s32.totalorder %s29, 1
      %p213 = por %p211, %p212
      %p214 = scmp.ne.s32.totalorder %s203, %s204
      %p215 = scmp.eq.s32.totalorder %s29, 0
      %p216 = por %p214, %p215
      %p217 = scmp.ne.s32.totalorder %s203, %s204
      %p218 = scmp.eq.s32.totalorder %s30, 1
      %p219 = por %p217, %p218
      %p221 = scmp.ne.s32.totalorder %s204, %s220
      %p222 = scmp.eq.s32.totalorder %s30, 0
      %p223 = por %p221, %p222
      %s224 = ssub.s32 %s31, %s43
      %s225 = ssub.s32 %s32, %s39
      %s226 = sor.u32 %s224, %s225
      %p227 = scmp.eq.s32.totalorder %s226, 0
      %s229 = sadd.s32 %s228, 1
      %s230 = scalar_select %p227, %s228, %s229
      %p233 = pneg %p227
      %p234 = scmp.eq.s32.totalorder %s24, 1
      %p235 = por %p233, %p234
      %p236 = scmp.ne.s32.totalorder %s228, %s231
      %p237 = scmp.eq.s32.totalorder %s24, 0
      %p238 = por %p236, %p237
      %p239 = scmp.ne.s32.totalorder %s228, %s231
      %p240 = scmp.eq.s32.totalorder %s29, 1
      %p241 = por %p239, %p240
      %p242 = scmp.ne.s32.totalorder %s231, %s232
      %p243 = scmp.eq.s32.totalorder %s29, 0
      %p244 = por %p242, %p243
      %p245 = scmp.ne.s32.totalorder %s231, %s232
      %p246 = scmp.eq.s32.totalorder %s30, 1
      %p247 = por %p245, %p246
      %p249 = scmp.ne.s32.totalorder %s232, %s248
      %p250 = scmp.eq.s32.totalorder %s30, 0
      %p251 = por %p249, %p250
      %s252 = ssub.s32 %s31, %s43
      %s253 = ssub.s32 %s32, %s39
      %s254 = sor.u32 %s252, %s253
      %p255 = scmp.eq.s32.totalorder %s254, 0
      %s257 = sadd.s32 %s256, 1
      %s258 = scalar_select %p255, %s256, %s257
      %p261 = pneg %p255
      %p262 = scmp.eq.s32.totalorder %s24, 1
      %p263 = por %p261, %p262
      %p264 = scmp.ne.s32.totalorder %s256, %s259
      %p265 = scmp.eq.s32.totalorder %s24, 0
      %p266 = por %p264, %p265
      %p267 = scmp.ne.s32.totalorder %s256, %s259
      %p268 = scmp.eq.s32.totalorder %s29, 1
      %p269 = por %p267, %p268
      %p270 = scmp.ne.s32.totalorder %s259, %s260
      %p271 = scmp.eq.s32.totalorder %s29, 0
      %p272 = por %p270, %p271
      %p273 = scmp.ne.s32.totalorder %s259, %s260
      %p274 = scmp.eq.s32.totalorder %s30, 1
      %p275 = por %p273, %p274
      %p277 = scmp.ne.s32.totalorder %s260, %s276
      %p278 = scmp.eq.s32.totalorder %s30, 0
      %p279 = por %p277, %p278
      %p280 = scmp.le.s32.totalorder 1, %s24
      %p281 = scmp.lt.s32.totalorder %s24, 3
      %p282 = pnand %p280, %p281
      %p283 = pneg %p282
      // Predicated region
      $region9: #{tpu_custom_call.1} parent=5 // pred_check
        _
      $region10: #{tpu_custom_call.1} parent=5 // pred_check_branch
        %285 = sbr.rel (%p282) target = $region12
      $region11: #{tpu_custom_call.1} parent=5 // pred_region
        %s286 = ssub.s32 %s24, 1
        // Predicated region
        $region13: #{tpu_custom_call.1} parent=11 // pred_check
          %p287 = pneg %p167
        $region14: #{tpu_custom_call.1} parent=11 // pred_check_branch
          %289 = sbr.rel (%p287) target = $region16
        $region15: #{tpu_custom_call.1} parent=11 // pred_region
          _
        $region16: #{tpu_custom_call.1} parent=11 // pred_fallthru
          _
        // Predicated region
        $region17: #{tpu_custom_call.1} parent=11 // pred_check
          %p290 = pneg %p188
        $region18: #{tpu_custom_call.1} parent=11 // pred_check_branch
          %292 = sbr.rel (%p290) target = $region20
        $region19: #{tpu_custom_call.1} parent=11 // pred_region
          _
        $region20: #{tpu_custom_call.1} parent=11 // pred_fallthru
          _
      $region12: #{tpu_custom_call.1} parent=5 // pred_fallthru
        _
      %p293 = scmp.lt.s32.totalorder %s24, 2
      // Predicated region
      $region21: #{tpu_custom_call.1} parent=5 // pred_check
        %p294 = pneg %p293
      $region22: #{tpu_custom_call.1} parent=5 // pred_check_branch
        %296 = sbr.rel (%p294) target = $region24
      $region23: #{tpu_custom_call.1} parent=5 // pred_region
        // Predicated region
        $region25: #{tpu_custom_call.1} parent=23 // pred_check
          %p297 = pneg %p56
        $region26: #{tpu_custom_call.1} parent=23 // pred_check_branch
          %299 = sbr.rel (%p297) target = $region28
        $region27: #{tpu_custom_call.1} parent=23 // pred_region
          %s300 = sand.u32 %s46, 1
          %s301 = scalar_lea.sflag [#allocation3], %s300
          %s302 = sand.u32 %s46, 1
          %s303 = smul.addr %s302, 4
          %s304 = scalar_lea.vmem [#allocation2], %s303
          %s306 = ssub.s32 64, 64
          %307 = vsyncadd %s301, %s306
          %s308 = smul.addr %s31, 64
          %s309 = scalar_lea.hbm %s0, %s308
          %s311 = sshll.u32 %s304, 4
          %s312 = int_to_ptr.vmem [resolvable:$true] %s311
          %314 = dma.hbm_to_vmem [thread:$0]  %s309, 64, %s312, %s301
        $region28: #{tpu_custom_call.1} parent=23 // pred_fallthru
          _
        // Predicated region
        $region29: #{tpu_custom_call.1} parent=23 // pred_check
          %p315 = pneg %p84
        $region30: #{tpu_custom_call.1} parent=23 // pred_check_branch
          %317 = sbr.rel (%p315) target = $region32
        $region31: #{tpu_custom_call.1} parent=23 // pred_region
          %s318 = sand.u32 %s24, 1
          %s319 = scalar_lea.sflag [#allocation6], %s318
          %s320 = sand.u32 %s74, 1
          %s321 = smul.addr %s320, 8
          %s322 = scalar_lea.vmem [#allocation5], %s321
          %s324 = ssub.s32 128, 128
          %325 = vsyncadd %s319, %s324
          %s326 = sadd.s32 %s32, %s31
          %s327 = smul.addr %s326, 128
          %s328 = scalar_lea.hbm %s1, %s327
          %s330 = sshll.u32 %s322, 4
          %s331 = int_to_ptr.vmem [resolvable:$true] %s330
          %333 = dma.hbm_to_vmem [thread:$0]  %s328, 128, %s331, %s319
        $region32: #{tpu_custom_call.1} parent=23 // pred_fallthru
          _
        // Predicated region
        $region33: #{tpu_custom_call.1} parent=23 // pred_check
          %p334 = pneg %p112
        $region34: #{tpu_custom_call.1} parent=23 // pred_check_branch
          %336 = sbr.rel (%p334) target = $region36
        $region35: #{tpu_custom_call.1} parent=23 // pred_region
          %p337 = scmp.lt.s32.totalorder %s31, 1
          %s338 = scalar_select %p337, %s31, 1
          %p339 = scmp.lt.s32.totalorder %s32, 0
          %s340 = scalar_select %p339, %s32, 0
          %s341 = sadd.s32 %s340, %s338
          %s342 = scalar_lea.vmem %s2, %s341
        $region36: #{tpu_custom_call.1} parent=23 // pred_fallthru
          _
        // Predicated region
        $region37: #{tpu_custom_call.1} parent=23 // pred_check
          %p343 = pneg %p140
        $region38: #{tpu_custom_call.1} parent=23 // pred_check_branch
          %345 = sbr.rel (%p343) target = $region40
        $region39: #{tpu_custom_call.1} parent=23 // pred_region
          %s346 = sand.u32 %s24, 1
          %s347 = scalar_lea.sflag [#allocation6], %s346
          %s348 = sand.u32 %s130, 1
          %s349 = scalar_lea.vmem [#allocation7], %s348
          %s351 = ssub.s32 16, 16
          %352 = vsyncadd %s347, %s351
          %s353 = sadd.s32 %s32, %s31
          %s354 = smul.addr %s353, 16
          %s355 = scalar_lea.hbm %s3, %s354
          %s357 = sshll.u32 %s349, 4
          %s358 = int_to_ptr.vmem [resolvable:$true] %s357
          %360 = dma.hbm_to_vmem [thread:$0]  %s355, 16, %s358, %s347
        $region40: #{tpu_custom_call.1} parent=23 // pred_fallthru
          _
      $region24: #{tpu_custom_call.1} parent=5 // pred_fallthru
        _
      %p361 = scmp.le.s32.totalorder 1, %s24
      %p362 = scmp.lt.s32.totalorder %s24, 3
      %p363 = pnand %p361, %p362
      %p364 = pneg %p363
      // Predicated region
      $region41: #{tpu_custom_call.1} parent=5 // pred_check
        _
      $region42: #{tpu_custom_call.1} parent=5 // pred_check_branch
        %366 = sbr.rel (%p363) target = $region44
      $region43: #{tpu_custom_call.1} parent=5 // pred_region
        %s367 = ssub.s32 %s24, 1
        %s368 = sand.u32 %s49, 1
        %s369 = scalar_lea.sflag [#allocation3], %s368
        %s370 = sand.u32 %s49, 1
        %s371 = smul.addr %s370, 4
        %s372 = scalar_lea.vmem [#allocation2], %s371
        // Predicated region
        $region45: #{tpu_custom_call.1} parent=43 // pred_check
          %p373 = pneg %p62
        $region46: #{tpu_custom_call.1} parent=43 // pred_check_branch
          %375 = sbr.rel (%p373) target = $region48
        $region47: #{tpu_custom_call.1} parent=43 // pred_region
          %376 = dma.done %s369, 64
        $region48: #{tpu_custom_call.1} parent=43 // pred_fallthru
          _
        %s377 = sand.u32 %s29, 1
        %s378 = scalar_lea.sflag [#allocation6], %s377
        %s379 = sand.u32 %s77, 1
        %s380 = smul.addr %s379, 8
        %s381 = scalar_lea.vmem [#allocation5], %s380
        // Predicated region
        $region49: #{tpu_custom_call.1} parent=43 // pred_check
          %p382 = pneg %p90
        $region50: #{tpu_custom_call.1} parent=43 // pred_check_branch
          %384 = sbr.rel (%p382) target = $region52
        $region51: #{tpu_custom_call.1} parent=43 // pred_region
          %385 = dma.done %s378, 128
        $region52: #{tpu_custom_call.1} parent=43 // pred_fallthru
          _
        %s386 = sand.u32 %s29, 1
        %s387 = scalar_lea.sflag [#allocation6], %s386
        %s388 = sand.u32 %s133, 1
        %s389 = scalar_lea.vmem [#allocation7], %s388
        // Predicated region
        $region53: #{tpu_custom_call.1} parent=43 // pred_check
          %p390 = pneg %p146
        $region54: #{tpu_custom_call.1} parent=43 // pred_check_branch
          %392 = sbr.rel (%p390) target = $region56
        $region55: #{tpu_custom_call.1} parent=43 // pred_region
          %393 = dma.done %s387, 16
        $region56: #{tpu_custom_call.1} parent=43 // pred_fallthru
          _
        %s394 = sand.u32 %s49, 1
        %s395 = scalar_lea.sflag [#allocation3], %s394
        %s396 = sand.u32 %s49, 1
        %s397 = smul.addr %s396, 4
        %s398 = scalar_lea.vmem [#allocation2], %s397
        %p399 = pneg %p62
        %p400 = pneg %p59
        %s401 = sand.u32 %s29, 1
        %s402 = scalar_lea.sflag [#allocation6], %s401
        %s403 = sand.u32 %s77, 1
        %s404 = smul.addr %s403, 8
        %s405 = scalar_lea.vmem [#allocation5], %s404
        %p406 = pneg %p90
        %p407 = pneg %p87
        %p408 = scmp.lt.s32.totalorder %s33, 1
        %s409 = scalar_select %p408, %s33, 1
        %p410 = scmp.lt.s32.totalorder %s34, 0
        %s411 = scalar_select %p410, %s34, 0
        %s412 = sadd.s32 %s411, %s409
        %s413 = scalar_lea.vmem %s2, %s412
        %p414 = pneg %p118
        %p415 = pneg %p115
        %s416 = sand.u32 %s29, 1
        %s417 = scalar_lea.sflag [#allocation6], %s416
        %s418 = sand.u32 %s133, 1
        %s419 = scalar_lea.vmem [#allocation7], %s418
        %p420 = pneg %p146
        %p421 = pneg %p143
        %p422 = pneg %p167
        %p423 = pneg %p164
        %p424 = pneg %p188
        %p425 = pneg %p185
        %p426 = pneg %p216
        %p427 = pneg %p213
        %s428 = sand.u32 %s203, 1
        %s429 = scalar_lea.sflag [#allocation4], %s428
        %s430 = sand.u32 %s203, 1
        %s431 = smul.addr %s430, 4
        %s432 = scalar_lea.vmem [#allocation8], %s431
        %p433 = pneg %p244
        %p434 = pneg %p241
        %p435 = scmp.lt.s32.totalorder %s33, 1
        %s436 = scalar_select %p435, %s33, 1
        %p437 = scmp.lt.s32.totalorder %s34, 0
        %s438 = scalar_select %p437, %s34, 0
        %s439 = sadd.s32 %s438, %s436
        %s440 = smul.addr %s439, 8
        %s441 = scalar_lea.vmem %s7, %s440
        %p442 = pneg %p272
        %p443 = pneg %p269
        %p444 = scmp.lt.s32.totalorder %s33, 1
        %s445 = scalar_select %p444, %s33, 1
        %p446 = scmp.lt.s32.totalorder %s34, 0
        %s447 = scalar_select %p446, %s34, 0
        %s448 = sadd.s32 %s447, %s445
        %s449 = smul.addr %s448, 8
        %s450 = scalar_lea.vmem %s8, %s449
        %p451 = scmp.lt.s32.totalorder %s33, 1
        %s452 = scalar_select %p451, %s33, 1
        %p453 = scmp.lt.s32.totalorder %s34, 0
        %s454 = scalar_select %p453, %s34, 0
        %s455 = sadd.s32 %s454, %s452
        %s456 = scalar_lea.vmem %s2, %s455
        %p457 = scmp.lt.s32.totalorder %s33, 1
        %s458 = scalar_select %p457, %s33, 1
        %p459 = scmp.lt.s32.totalorder %s34, 0
        %s460 = scalar_select %p459, %s34, 0
        %s461 = sadd.s32 %s460, %s458
        %s462 = smul.addr %s461, 8
        %s463 = scalar_lea.vmem %s7, %s462
        %p464 = scmp.lt.s32.totalorder %s33, 1
        %s465 = scalar_select %p464, %s33, 1
        %p466 = scmp.lt.s32.totalorder %s34, 0
        %s467 = scalar_select %p466, %s34, 0
        %s468 = sadd.s32 %s467, %s465
        %s469 = smul.addr %s468, 8
        %s470 = scalar_lea.vmem %s8, %s469
        %v472 = vld [vmem:[%s456] sm:$0x1]
        %v473 = vld [vmem:[%s389] sm:$0x1]
        %v474 = vld [vmem:[%s372] sm:$0xf]
        %v475 = vlaneseq
        %v476 = vshrl.u32 %v475, 7
        %v477 = vadd.s32 %v476, 8
        %v478 = vlaneseq
        %v479 = vshrl.u32 %v478, 7
        %v480 = vsub.s32 0, %v479
        %v481 = vrot.slane %v472, %v480
        %vm482 = vcmp.eq.s32.totalorder %v476, %v481
        %vm483 = vcmp.eq.s32.totalorder %v477, %v481
        %v484 = vsel %vm482, 1, 0
        %v485 = vsel %vm483, 1, 0
        %v486 = vcvt.s32.f32 %v484
        %v487 = vcvt.s32.f32 %v485
        %v488 = vpack.c.bf16 %v487, %v486
        %vm489 = vcmask 130048
        %v491 = vsel %vm489, %v474, 0
        %493 = vmatprep.subr.bf16.mxu0 0
        %494 = vmatpush1.bf16.msra.mxu0 0
        %495 = vmatprep.subr.bf16.mxu0 0
        %496 = vmatpush1.bf16.msra.mxu0 0
        %497 = vmatprep.subr.bf16.mxu0 0
        %498 = vmatpush1.bf16.msra.mxu0 0
        %499 = vmatprep.subr.bf16.mxu0 0
        %500 = vmatpush1.bf16.msra.mxu0 0
        %501 = vmatprep.subr.bf16.mxu0 0
        %502 = vmatpush1.bf16.msra.mxu0 0
        %503 = vmatprep.subr.bf16.mxu0 0
        %504 = vmatpush1.bf16.msra.mxu0 0
        %505 = vmatprep.subr.bf16.mxu0 0
        %506 = vmatpush1.bf16.msra.mxu0 0
        %507 = vmatprep.subr.bf16.mxu0 0
        %508 = vmatpush1.bf16.msra.mxu0 %v488
        %509 = vmatprep.subr.bf16.mxu0 0
        %510 = vmatpush2.bf16.msra.mxu0 0
        %511 = vmatprep.subr.bf16.mxu0 0
        %512 = vmatpush2.bf16.msra.mxu0 0
        %513 = vmatprep.subr.bf16.mxu0 0
        %514 = vmatpush2.bf16.msra.mxu0 0
        %515 = vmatprep.subr.bf16.mxu0 0
        %516 = vmatpush2.bf16.msra.mxu0 0
        %517 = vmatprep.subr.bf16.mxu0 0
        %518 = vmatpush2.bf16.msra.mxu0 0
        %519 = vmatprep.subr.bf16.mxu0 0
        %520 = vmatpush2.bf16.msra.mxu0 0
        %521 = vmatprep.subr.bf16.mxu0 0
        %522 = vmatpush2.bf16.msra.mxu0 0
        %523 = vmatprep.subr.bf16.mxu0 0
        %524 = vmatpush2.bf16.msra.mxu0 0
        %525 = vmatprep.mubr.bf16.mxu0 0
        %526 = vmatmul.mubr.bf16.gmra.mxu0 %v491
        %v527 = vpop.f32.mrf.mxu0
        %v528 = vadd.f32 0.0, %v527
        %v529 = vpop.f32.mrf.mxu0
        %v530 = vpop.f32.mrf.mxu0
        %v531 = vpop.f32.mrf.mxu0
        %532 = vdwg.mxu0
        %v533 = vld [vmem:[%s381] sm:$0xff]
        %v534 = vld [vmem:[%s5] sm:$0xff]
        %v535 = vld [vmem:[%s5 + $0x8] sm:$0xff]
        %v537 = vsel %vm489, %v533, 0
        %539 = vmatprep.subr.mxu0 0.0
        %540 = vmatpush1.msra.mxu0 0.0
        %541 = vmatprep.subr.mxu0 0.0
        %542 = vmatpush1.msra.mxu0 0.0
        %543 = vmatprep.subr.mxu0 0.0
        %544 = vmatpush1.msra.mxu0 0.0
        %545 = vmatprep.subr.mxu0 0.0
        %546 = vmatpush1.msra.mxu0 0.0
        %547 = vmatprep.subr.mxu0 0.0
        %548 = vmatpush1.msra.mxu0 0.0
        %549 = vmatprep.subr.mxu0 0.0
        %550 = vmatpush1.msra.mxu0 0.0
        %551 = vmatprep.subr.mxu0 0.0
        %552 = vmatpush1.msra.mxu0 0.0
        %553 = vmatprep.subr.mxu0 0.0
        %554 = vmatpush1.msra.mxu0 0.0
        %555 = vmatprep.subr.mxu0 0.0
        %556 = vmatpush1.msra.mxu0 0.0
        %557 = vmatprep.subr.mxu0 0.0
        %558 = vmatpush1.msra.mxu0 0.0
        %559 = vmatprep.subr.mxu0 0.0
        %560 = vmatpush1.msra.mxu0 0.0
        %561 = vmatprep.subr.mxu0 0.0
        %562 = vmatpush1.msra.mxu0 0.0
        %563 = vmatprep.subr.mxu0 0.0
        %564 = vmatpush1.msra.mxu0 0.0
        %565 = vmatprep.subr.mxu0 0.0
        %566 = vmatpush1.msra.mxu0 0.0
        %567 = vmatprep.subr.mxu0 0.0
        %568 = vmatpush1.msra.mxu0 %v535
        %569 = vmatprep.subr.mxu0 0.0
        %570 = vmatpush1.msra.mxu0 %v534
        %571 = vmatprep.subr.mxu0 0.0
        %572 = vmatpush2.msra.mxu0 0.0
        %573 = vmatprep.subr.mxu0 0.0
        %574 = vmatpush2.msra.mxu0 0.0
        %575 = vmatprep.subr.mxu0 0.0
        %576 = vmatpush2.msra.mxu0 0.0
        %577 = vmatprep.subr.mxu0 0.0
        %578 = vmatpush2.msra.mxu0 0.0
        %579 = vmatprep.subr.mxu0 0.0
        %580 = vmatpush2.msra.mxu0 0.0
        %581 = vmatprep.subr.mxu0 0.0
        %582 = vmatpush2.msra.mxu0 0.0
        %583 = vmatprep.subr.mxu0 0.0
        %584 = vmatpush2.msra.mxu0 0.0
        %585 = vmatprep.subr.mxu0 0.0
        %586 = vmatpush2.msra.mxu0 0.0
        %587 = vmatprep.subr.mxu0 0.0
        %588 = vmatpush2.msra.mxu0 0.0
        %589 = vmatprep.subr.mxu0 0.0
        %590 = vmatpush2.msra.mxu0 0.0
        %591 = vmatprep.subr.mxu0 0.0
        %592 = vmatpush2.msra.mxu0 0.0
        %593 = vmatprep.subr.mxu0 0.0
        %594 = vmatpush2.msra.mxu0 0.0
        %595 = vmatprep.subr.mxu0 0.0
        %596 = vmatpush2.msra.mxu0 0.0
        %597 = vmatprep.subr.mxu0 0.0
        %598 = vmatpush2.msra.mxu0 0.0
        %599 = vmatprep.subr.mxu0 0.0
        %600 = vmatpush2.msra.mxu0 0.0
        %601 = vmatprep.subr.mxu0 0.0
        %602 = vmatpush2.msra.mxu0 0.0
        %603 = vmatprep.mubr.f32.mxu0 0.0
        %604 = vmatmul.mubr.f32.gmra.mxu0 %v537
        %v605 = vpop.f32.mrf.mxu0
        %v606 = vadd.f32 %v528, %v605
        %v607 = vpop.f32.mrf.mxu0
        %608 = vdwg.mxu0
        %v609 = vld [vmem:[%s4] sm:$0xff]
        %611 = vset.pattern.permute.xlu0 0
        %612 = vperm.xlu0 %611, %v609
        %v613 = vpop.permute.xlu0 %612
        %v616 = vlaneseq
        %v617 = vshrl.u32 %v616, 7
        %v618 = vsub.s32 0, %v617
        %v619 = vrot.slane %v473, %v618
        %v621 = vmul.f32 %v613, %v619
        %v622 = vadd.f32 %v606, %v621
        %v623 = vpack.c.bf16 %v622, %v622
        %624 = vst [vmem:[%s432] sm:$0xf] %v623
        %625 = vadd.xlane.f32.xlu0 %v622
        %v626 = vpop.xlane.xlu0 %625
        %vm627 = vcmask 7168
        %628 = vst.msk [vmem:[%s463] sm:$0xff] %vm627, %v626
        %v629 = vmul.f32 %v622, %v622
        %630 = vadd.xlane.f32.xlu0 %v629
        %v631 = vpop.xlane.xlu0 %630
        %632 = vst.msk [vmem:[%s470] sm:$0xff] %vm627, %v631
        %s633 = sand.u32 %s203, 1
        %s634 = scalar_lea.sflag [#allocation4], %s633
        %s635 = sand.u32 %s203, 1
        %s636 = smul.addr %s635, 4
        %s637 = scalar_lea.vmem [#allocation8], %s636
        %p638 = scmp.lt.s32.totalorder %s33, 1
        %s639 = scalar_select %p638, %s33, 1
        %p640 = scmp.lt.s32.totalorder %s34, 0
        %s641 = scalar_select %p640, %s34, 0
        %s642 = sadd.s32 %s641, %s639
        %s643 = smul.addr %s642, 8
        %s644 = scalar_lea.vmem %s7, %s643
        %p645 = scmp.lt.s32.totalorder %s33, 1
        %s646 = scalar_select %p645, %s33, 1
        %p647 = scmp.lt.s32.totalorder %s34, 0
        %s648 = scalar_select %p647, %s34, 0
        %s649 = sadd.s32 %s648, %s646
        %s650 = smul.addr %s649, 8
        %s651 = scalar_lea.vmem %s8, %s650
        // Predicated region
        $region57: #{tpu_custom_call.1} parent=43 // pred_check
          %p652 = pneg %p213
        $region58: #{tpu_custom_call.1} parent=43 // pred_check_branch
          %654 = sbr.rel (%p652) target = $region60
        $region59: #{tpu_custom_call.1} parent=43 // pred_region
          %s656 = ssub.s32 64, 64
          %657 = vsyncadd %s634, %s656
          %s658 = sadd.s32 %s34, %s33
          %s659 = smul.addr %s658, 64
          %s660 = scalar_lea.hbm %s6, %s659
          %s662 = sshll.u32 %s637, 4
          %s663 = int_to_ptr.vmem [resolvable:$true] %s662
          %665 = dma.vmem_to_hbm [thread:$0]  %s663, 64, %s660, %s634
        $region60: #{tpu_custom_call.1} parent=43 // pred_fallthru
          _
        // Predicated region
        $region61: #{tpu_custom_call.1} parent=43 // pred_check
          %p666 = pneg %p241
        $region62: #{tpu_custom_call.1} parent=43 // pred_check_branch
          %668 = sbr.rel (%p666) target = $region64
        $region63: #{tpu_custom_call.1} parent=43 // pred_region
          _
        $region64: #{tpu_custom_call.1} parent=43 // pred_fallthru
          _
        // Predicated region
        $region65: #{tpu_custom_call.1} parent=43 // pred_check
          %p669 = pneg %p269
        $region66: #{tpu_custom_call.1} parent=43 // pred_check_branch
          %671 = sbr.rel (%p669) target = $region68
        $region67: #{tpu_custom_call.1} parent=43 // pred_region
          _
        $region68: #{tpu_custom_call.1} parent=43 // pred_fallthru
          _
      $region44: #{tpu_custom_call.1} parent=5 // pred_fallthru
        _
      %p672 = scmp.le.s32.totalorder 2, %s24
      // Predicated region
      $region69: #{tpu_custom_call.1} parent=5 // pred_check
        %p673 = pneg %p672
      $region70: #{tpu_custom_call.1} parent=5 // pred_check_branch
        %675 = sbr.rel (%p673) target = $region72
      $region71: #{tpu_custom_call.1} parent=5 // pred_region
        %s676 = ssub.s32 %s24, 2
        // Predicated region
        $region73: #{tpu_custom_call.1} parent=71 // pred_check
          %p677 = pneg %p219
        $region74: #{tpu_custom_call.1} parent=71 // pred_check_branch
          %679 = sbr.rel (%p677) target = $region76
        $region75: #{tpu_custom_call.1} parent=71 // pred_region
          %s680 = sand.u32 %s204, 1
          %s681 = scalar_lea.sflag [#allocation4], %s680
          %s682 = sand.u32 %s204, 1
          %s683 = smul.addr %s682, 4
          %s684 = scalar_lea.vmem [#allocation8], %s683
          %685 = dma.done %s681, 64
        $region76: #{tpu_custom_call.1} parent=71 // pred_fallthru
          _
        // Predicated region
        $region77: #{tpu_custom_call.1} parent=71 // pred_check
          %p686 = pneg %p247
        $region78: #{tpu_custom_call.1} parent=71 // pred_check_branch
          %688 = sbr.rel (%p686) target = $region80
        $region79: #{tpu_custom_call.1} parent=71 // pred_region
          %p689 = scmp.lt.s32.totalorder %s35, 1
          %s690 = scalar_select %p689, %s35, 1
          %p691 = scmp.lt.s32.totalorder %s36, 0
          %s692 = scalar_select %p691, %s36, 0
          %s693 = sadd.s32 %s692, %s690
          %s694 = smul.addr %s693, 8
          %s695 = scalar_lea.vmem %s7, %s694
        $region80: #{tpu_custom_call.1} parent=71 // pred_fallthru
          _
        // Predicated region
        $region81: #{tpu_custom_call.1} parent=71 // pred_check
          %p696 = pneg %p275
        $region82: #{tpu_custom_call.1} parent=71 // pred_check_branch
          %698 = sbr.rel (%p696) target = $region84
        $region83: #{tpu_custom_call.1} parent=71 // pred_region
          %p699 = scmp.lt.s32.totalorder %s35, 1
          %s700 = scalar_select %p699, %s35, 1
          %p701 = scmp.lt.s32.totalorder %s36, 0
          %s702 = scalar_select %p701, %s36, 0
          %s703 = sadd.s32 %s702, %s700
          %s704 = smul.addr %s703, 8
          %s705 = scalar_lea.vmem %s8, %s704
        $region84: #{tpu_custom_call.1} parent=71 // pred_fallthru
          _
      $region72: #{tpu_custom_call.1} parent=5 // pred_fallthru
        _
    $region6: #{tpu_custom_call.1} parent=1 // loop_footer
      %s28 = sadd.s32 1, %s24
    $region7: #{tpu_custom_call.1} parent=1 // loop_footer_branch
      %23 = sbr.rel target = $region3
    $region8: #{tpu_custom_call.1} parent=1 // loop_exit
      _
    %706 = vsyncpa [#allocation3], 1
    %s707 = scalar_lea.sflag [#allocation3], 1
    %708 = vsyncpa %s707, 1
    %709 = vsyncpa [#allocation6], 1
    %s710 = scalar_lea.sflag [#allocation6], 1
    %711 = vsyncpa %s710, 1
    %712 = vsyncpa [#allocation4], 1
    %s713 = scalar_lea.sflag [#allocation4], 1
    %714 = vsyncpa %s713, 1

</llo_original>
